<compile_context>
chip_gen: v7x
topology: tpu7x:2x2x1
jax: 0.10.0
libtpu: 0.0.40
codegen_flags: <defaults>
</compile_context>

<pallas_src>
import functools

import jax
import jax.numpy as jnp
from jax.experimental import pallas as pl
from jax.experimental.pallas import tpu as pltpu


# ----------------------------------------------------------------------------
# Synthetic config (stands in for FastSpeech2Config).  Pitch/energy are
# phone-level (masked by src_mask); energy uses 'mae' to exercise both paths.
# ----------------------------------------------------------------------------
CONFIG = dict(
    pitch_level="phone",     pitch_loss="mse",    pitch_loss_weight=0.1,
    energy_level="phone",    energy_loss="mae",   energy_loss_weight=0.1,
    duration_loss="mse",     duration_loss_weight=0.1,
    mel_loss="mse",          mel_loss_weight=1.0,
    use_postnet=True,        postnet_loss_weight=1.0,
    learn_alignment=False,
    attn_ctc_loss_weight=1.0,
    attn_bin_loss_weight=1.0,
    attn_bin_loss_warmup_epochs=100,
)
# TODO(synk): AttentionCTCLoss / AttentionBinarizationLoss (learn_alignment
# branch) are external modules not shown in the reference; learn_alignment is
# False so that branch is never taken.

_N_OUT = 5                         # [pitch, energy, duration, spec, postnet]
_MAX_BLOCK_ROWS = 4096             # power of 2; ~20 MiB of double-buffered
                                   # input tiles + 4 MiB accumulator at n_mels<=128
_VMEM_LIMIT_BYTES = 32 * 1024 * 1024  # safe on v5e/v6e (128 MiB) and v7x (64 MiB)


def _num_tensorcores():
    """2 only on chips with 2 TensorCores per device (v7x); else 1."""
    try:
        kind = jax.devices()[0].device_kind.lower().replace(" ", "")
        if "v7" in kind or "tpu7" in kind:
            return 2
    except Exception:
        pass
    return 1


# ----------------------------------------------------------------------------
# Kernel.  Per-core output layout (SMEM, float32[1, 5]) -- each entry is the
# masked numerator of the statically-selected statistic for that term:
#   [0] pitch   [1] energy   [2] duration   [3] spec   [4] postnet
# ----------------------------------------------------------------------------
def _fs2_loss_sums_kernel(
    var_ref,        # (7, B, T_src) f32: pitch p/t, energy p/t, log_dur_pred,
                    #                    dur_tgt (f32), src_mask
    spec_pred_ref,  # (block_rows, n_mels) tile (native dtype)
    postnet_ref,    # (block_rows, n_mels) tile
    spec_tgt_ref,   # (block_rows, n_mels) tile
    tmask_ref,      # (block_rows, 1)      tile ({0,1} values)
    out_ref,        # (1, 5) f32 SMEM block (this core's partial sums)
    acc_ref,        # (n_acc, block_rows, n_mels) f32 VMEM accumulators
    *,
    kinds, use_postnet, total_rows, block_rows, tiles_per_core, need_tail_mask,
):
    pitch_kind, energy_kind, dur_kind, mel_kind = kinds
    c = pl.program_id(0)        # core split ("parallel"; size 1 on v5e/v6e)
    i = pl.program_id(1)        # mel row-tile scan ("arbitrary" / reduction)

    # ---- init per-core accumulators / output block -------------------------
    @pl.when(i == 0)
    def _init():
        acc_ref[...] = jnp.zeros_like(acc_ref)
        for k in range(_N_OUT):                  # SMEM scalar stores, once
            out_ref[0, k] = jnp.float32(0.0)

    # ---- variance-level terms: tiny, computed once (core 0, step 0) --------
    @pl.when(jnp.logical_and(c == 0, i == 0))
    def _variance():
        src_mask = var_ref[6]

        def stat(diff, kind):                    # static kind -> one statistic
            return jnp.sum(diff * diff) if kind == "mse" else jnp.sum(jnp.abs(diff))

        # {0,1} mask: (p - t)*m == p*m - t*m and |(p - t)*m| == |p*m - t*m|.
        out_ref[0, 0] = stat((var_ref[0] - var_ref[1]) * src_mask, pitch_kind)
        out_ref[0, 1] = stat((var_ref[2] - var_ref[3]) * src_mask, energy_kind)
        # torch.log(dur + 1); jnp.log1p would be slightly more accurate (optional).
        out_ref[0, 2] = stat(
            (var_ref[4] - jnp.log(var_ref[5] + 1.0)) * src_mask, dur_kind)

    # ---- mel terms: elementwise accumulate only (defer cross-lane reduces) --
    f32 = jnp.float32
    tmask = tmask_ref[...].astype(f32)               # (block_rows, 1)
    spec_tgt = spec_tgt_ref[...].astype(f32)
    d_spec = (spec_pred_ref[...].astype(f32) - spec_tgt) * tmask
    if use_postnet:
        d_post = (postnet_ref[...].astype(f32) - spec_tgt) * tmask
    if need_tail_mask:
        # Rows past the real extent (partial last tile, or the clamped
        # duplicate tile of an idle core) must contribute exactly zero even if
        # the un-DMA'd padding holds NaN/Inf (NaN*0 would otherwise leak).
        row_ids = jax.lax.broadcasted_iota(jnp.int32, (block_rows, 1), 0)
        tile_idx = c * tiles_per_core + i
        valid = (tile_idx * block_rows + row_ids) < total_rows
        d_spec = jnp.where(valid, d_spec, 0.0)
        if use_postnet:
            d_post = jnp.where(valid, d_post, 0.0)

    def contrib(d):                                  # static mel loss kind
        return d * d if mel_kind == "mse" else jnp.abs(d)

    acc_ref[0] += contrib(d_spec)
    if use_postnet:
        acc_ref[1] += contrib(d_post)

    # ---- finalize: one cross-lane reduce per term, once per core -----------
    @pl.when(i == pl.num_programs(1) - 1)
    def _finalize():
        out_ref[0, 3] = jnp.sum(acc_ref[0])
        if use_postnet:
            out_ref[0, 4] = jnp.sum(acc_ref[1])


def _loss_sums(var_pack, spec_pred, postnet_pred, spec_tgt, tgt_mask, *,
               kinds, use_postnet, n_cores):
    """Returns float32[5] of masked loss numerators (sum d^2 or sum |d|)."""
    total_rows, n_mels = spec_pred.shape
    block_rows = min(_MAX_BLOCK_ROWS, max(8, int(pl.next_power_of_2(total_rows))))
    total_tiles = pl.cdiv(total_rows, block_rows)
    tiles_per_core = pl.cdiv(total_tiles, n_cores)
    need_tail_mask = (total_rows % block_rows != 0) or \
                     (tiles_per_core * n_cores != total_tiles)
    n_acc = 2 if use_postnet else 1

    def mel_map(c, i):
        t = c * tiles_per_core + i
        # Clamp so the DMA never addresses past the array; the kernel zeroes
        # any duplicated / out-of-range rows via the tail mask.
        return (jnp.minimum(t, total_tiles - 1), 0)

    var_spec = pl.BlockSpec(var_pack.shape, lambda c, i: (0, 0, 0))
    mel_spec = pl.BlockSpec((block_rows, n_mels), mel_map)
    mask_spec = pl.BlockSpec((block_rows, 1), mel_map)

    kernel = functools.partial(
        _fs2_loss_sums_kernel,
        kinds=kinds, use_postnet=use_postnet,
        total_rows=total_rows, block_rows=block_rows,
        tiles_per_core=tiles_per_core, need_tail_mask=need_tail_mask)

    in_bytes = sum(int(a.size) * a.dtype.itemsize
                   for a in (var_pack, spec_pred, postnet_pred, spec_tgt, tgt_mask))
    cost = pl.CostEstimate(
        flops=4 * (1 + int(use_postnet)) * int(spec_pred.size) + 4 * int(var_pack.size),
        transcendentals=int(var_pack.shape[1] * var_pack.shape[2]),
        bytes_accessed=in_bytes + n_cores * _N_OUT * 4)

    partial_sums = pl.pallas_call(
        kernel,
        out_shape=jax.ShapeDtypeStruct((n_cores, _N_OUT), jnp.float32),
        grid_spec=pltpu.PrefetchScalarGridSpec(
            num_scalar_prefetch=0,
            grid=(n_cores, tiles_per_core),
            in_specs=[var_spec, mel_spec, mel_spec, mel_spec, mask_spec],
            out_specs=pl.BlockSpec((1, _N_OUT), lambda c, i: (c, 0),
                                   memory_space=pltpu.MemorySpace.SMEM),
            scratch_shapes=[pltpu.VMEM((n_acc, block_rows, n_mels), jnp.float32)]),
        compiler_params=pltpu.CompilerParams(
            dimension_semantics=("parallel", "arbitrary"),
            vmem_limit_bytes=_VMEM_LIMIT_BYTES),
        cost_estimate=cost,
    )(var_pack, spec_pred, postnet_pred, spec_tgt, tgt_mask)

    return jnp.sum(partial_sums, axis=0)   # combine per-core halves


# ----------------------------------------------------------------------------
# Wrapper reproducing FastSpeech2Loss.forward semantics.
# ----------------------------------------------------------------------------
def fastspeech2_loss(output, batch, current_epoch, config=CONFIG,
                     frozen_components=None):
    del current_epoch, frozen_components  # only used by learn_alignment branch
    assert config["pitch_level"] == "phone" and config["energy_level"] == "phone"
    # TODO(synk): frame-level pitch/energy (masked by tgt_mask) not wired up.

    pitch_pred = output["pitch_prediction"]
    pitch_tgt = output["pitch_target"]
    energy_pred = output["energy_prediction"]
    energy_tgt = output["energy_target"]
    log_dur_pred = output["duration_prediction"]
    dur_tgt = output["duration_target"]
    src_mask = output["src_mask"]
    tgt_mask = output["tgt_mask"]
    spec_pred = output["output"]
    postnet_pred = output["postnet_output"]
    spec_tgt = batch["mel"]
    use_postnet = bool(config["use_postnet"])

    # Pack the tiny variance-level tensors into a single VMEM-resident input.
    var_pack = jnp.stack([
        pitch_pred, pitch_tgt, energy_pred, energy_tgt,
        log_dur_pred, dur_tgt.astype(jnp.float32), src_mask.astype(jnp.float32),
    ]).astype(jnp.float32)

    # Flatten mel tensors to a lane-friendly 2D layout (free reshape) and keep
    # their native dtype (bf16 producers stream bf16; kernel upcasts to f32).
    n_mels = spec_pred.shape[-1]
    spec_pred2 = spec_pred.reshape(-1, n_mels)
    spec_tgt2 = spec_tgt.reshape(-1, n_mels)
    if use_postnet:
        postnet2 = postnet_pred.reshape(-1, n_mels)
    else:
        postnet2 = spec_pred2   # placeholder; kernel statically skips it
    tgt_mask2 = tgt_mask.astype(spec_pred2.dtype).reshape(-1, 1)

    kinds = (config["pitch_loss"], config["energy_loss"],
             config["duration_loss"], config["mel_loss"])
    sums = _loss_sums(var_pack, spec_pred2, postnet2, spec_tgt2, tgt_mask2,
                      kinds=kinds, use_postnet=use_postnet,
                      n_cores=_num_tensorcores())

    # nn.MSELoss / nn.L1Loss in the reference receive the full masked tensors,
    # i.e. they reduce by mean over ALL elements (padding included).
    n_var = float(pitch_pred.size)
    n_spec = float(spec_pred.size)

    losses = {}
    losses["pitch"] = sums[0] / n_var * config["pitch_loss_weight"]
    losses["energy"] = sums[1] / n_var * config["energy_loss_weight"]
    losses["duration"] = sums[2] / n_var * config["duration_loss_weight"]
    losses["spec"] = sums[3] / n_spec * config["mel_loss_weight"]
    if use_postnet:
        losses["postnet"] = sums[4] / n_spec * config["postnet_loss_weight"]
    # learn_alignment branch intentionally skipped (see TODO above).
    losses["total"] = sum(losses.values())
    return losses


# ----------------------------------------------------------------------------
# Pure-JAX reference (mirrors the PyTorch module) for verification.
# ----------------------------------------------------------------------------
def _reference_losses(output, batch, config=CONFIG):
    fns = {"mse": lambda a, b: jnp.mean((a - b) ** 2),
           "mae": lambda a, b: jnp.mean(jnp.abs(a - b))}
    src_mask = output["src_mask"]
    tgt_mask = output["tgt_mask"]
    losses = {}
    pp, pt = output["pitch_prediction"] * src_mask, output["pitch_target"] * src_mask
    losses["pitch"] = fns[config["pitch_loss"]](pp, pt) * config["pitch_loss_weight"]
    ep, et = output["energy_prediction"] * src_mask, output["energy_target"] * src_mask
    losses["energy"] = fns[config["energy_loss"]](ep, et) * config["energy_loss_weight"]
    ldt = jnp.log(output["duration_target"].astype(jnp.float32) + 1.0) * src_mask
    ldp = output["duration_prediction"] * src_mask
    losses["duration"] = fns[config["duration_loss"]](ldp, ldt) * config["duration_loss_weight"]
    tm = tgt_mask[:, :, None]
    sp, st = output["output"] * tm, batch["mel"] * tm
    losses["spec"] = fns[config["mel_loss"]](sp, st) * config["mel_loss_weight"]
    if config["use_postnet"]:
        pn = output["postnet_output"] * tm
        losses["postnet"] = fns[config["mel_loss"]](pn, st) * config["postnet_loss_weight"]
    losses["total"] = sum(losses.values())
    return losses


# ----------------------------------------------------------------------------
# Demo / smoke test
# ----------------------------------------------------------------------------
if __name__ == "__main__":
    B, T_SRC, T_MEL, N_MELS = 2, 8, 16, 32
    key = jax.random.PRNGKey(0)
    keys = jax.random.split(key, 8)

    # length-based boolean masks (float 0/1), mimicking src/tgt padding masks
    src_lens = jnp.array([T_SRC, T_SRC - 2], dtype=jnp.int32)
    mel_lens = jnp.array([T_MEL, T_MEL - 4], dtype=jnp.int32)
    src_mask = (jnp.arange(T_SRC)[None, :] < src_lens[:, None]).astype(jnp.float32)
    tgt_mask = (jnp.arange(T_MEL)[None, :] < mel_lens[:, None]).astype(jnp.float32)

    output = {
        "pitch_prediction": jax.random.normal(keys[0], (B, T_SRC), jnp.float32),
        "pitch_target": jax.random.normal(keys[1], (B, T_SRC), jnp.float32),
        "energy_prediction": jax.random.normal(keys[2], (B, T_SRC), jnp.float32),
        "energy_target": jax.random.normal(keys[3], (B, T_SRC), jnp.float32),
        "duration_prediction": jax.random.normal(keys[4], (B, T_SRC), jnp.float32),
        "duration_target": jax.random.randint(keys[5], (B, T_SRC), 0, 5, jnp.int32),
        "output": jax.random.normal(keys[6], (B, T_MEL, N_MELS), jnp.float32),
        "postnet_output": jax.random.normal(keys[7], (B, T_MEL, N_MELS), jnp.float32),
        "src_mask": src_mask,
        "tgt_mask": tgt_mask,
    }
    batch = {
        "mel": jax.random.normal(jax.random.PRNGKey(1), (B, T_MEL, N_MELS), jnp.float32),
        "src_lens": src_lens,
        "mel_lens": mel_lens,
    }

    losses = fastspeech2_loss(output, batch, current_epoch=1)
    losses = jax.tree_util.tree_map(jax.block_until_ready, losses)

    assert set(losses) == {"pitch", "energy", "duration", "spec", "postnet", "total"}
    assert all(bool(jnp.isfinite(v)) for v in losses.values())
    expected_total = sum(v for k, v in losses.items() if k != "total")
    assert bool(jnp.allclose(losses["total"], expected_total, rtol=1e-5))

    ref = _reference_losses(output, batch)
    for name in losses:
        assert bool(jnp.allclose(losses[name], ref[name], rtol=1e-4, atol=1e-6)), (
            name, losses[name], ref[name])

    print("KERNEL_OK")
</pallas_src>

<mosaic_0001>
module attributes {stable_mosaic.version = 11 : i64} {
  func.func @_fs2_loss_sums_kernel(%arg0: i32, %arg1: i32, %arg2: memref<7x2x8xf32, #tpu.memory_space<vmem>>, %arg3: memref<32x32xf32, #tpu.memory_space<vmem>>, %arg4: memref<32x32xf32, #tpu.memory_space<vmem>>, %arg5: memref<32x32xf32, #tpu.memory_space<vmem>>, %arg6: memref<32x1xf32, #tpu.memory_space<vmem>>, %arg7: memref<1x5xf32, #tpu.memory_space<smem>>, %arg8: memref<2x32x32xf32, #tpu.memory_space<vmem>>) attributes {dimension_semantics = [#tpu.dimension_semantics<parallel>, #tpu.dimension_semantics<arbitrary>], iteration_bounds = array<i64: 1, 1>, scalar_prefetch = 0 : i64, scratch_operands = 1 : i64, tpu.core_type = #tpu.core_type<tc>, window_params = [{pipeline_mode = #tpu.pipeline_mode<synchronous>, transform_indices = @transform_0, window_bounds = array<i64: 7, 2, 8>}, {transform_indices = @transform_1, window_bounds = array<i64: 32, 32>}, {transform_indices = @transform_2, window_bounds = array<i64: 32, 32>}, {transform_indices = @transform_3, window_bounds = array<i64: 32, 32>}, {transform_indices = @transform_4, window_bounds = array<i64: 32, 1>}, {transform_indices = @transform_5, window_bounds = array<i64: 1, 5>}]} {
    %c0_i32 = arith.constant 0 : i32
    %0 = arith.cmpi eq, %arg1, %c0_i32 : i32
    %1 = arith.extui %0 : i1 to i32
    %c0_i32_0 = arith.constant 0 : i32
    %2 = arith.cmpi ne, %1, %c0_i32_0 : i32
    scf.if %2 {
      %cst = arith.constant 0.000000e+00 : f32
      %35 = vector.broadcast %cst : f32 to vector<2x32x32xf32>
      %c0_24 = arith.constant 0 : index
      %c0_25 = arith.constant 0 : index
      %c0_26 = arith.constant 0 : index
      %36 = vector.load %arg8[%c0_24, %c0_25, %c0_26] : memref<2x32x32xf32, #tpu.memory_space<vmem>>, vector<2x32x32xf32>
      tpu.vector_store %arg8[%c0_24, %c0_25, %c0_26], %35 {strides = array<i32>} : memref<2x32x32xf32, #tpu.memory_space<vmem>>, vector<2x32x32xf32>,
      %cst_27 = arith.constant 0.000000e+00 : f32
      %c0_28 = arith.constant 0 : index
      %c0_29 = arith.constant 0 : index
      %37 = memref.load %arg7[%c0_28, %c0_29] : memref<1x5xf32, #tpu.memory_space<smem>>
      memref.store %cst_27, %arg7[%c0_28, %c0_29] : memref<1x5xf32, #tpu.memory_space<smem>>
      %cst_30 = arith.constant 0.000000e+00 : f32
      %c0_31 = arith.constant 0 : index
      %c1_32 = arith.constant 1 : index
      %38 = memref.load %arg7[%c0_31, %c1_32] : memref<1x5xf32, #tpu.memory_space<smem>>
      memref.store %cst_30, %arg7[%c0_31, %c1_32] : memref<1x5xf32, #tpu.memory_space<smem>>
      %cst_33 = arith.constant 0.000000e+00 : f32
      %c0_34 = arith.constant 0 : index
      %c2 = arith.constant 2 : index
      %39 = memref.load %arg7[%c0_34, %c2] : memref<1x5xf32, #tpu.memory_space<smem>>
      memref.store %cst_33, %arg7[%c0_34, %c2] : memref<1x5xf32, #tpu.memory_space<smem>>
      %cst_35 = arith.constant 0.000000e+00 : f32
      %c0_36 = arith.constant 0 : index
      %c3 = arith.constant 3 : index
      %40 = memref.load %arg7[%c0_36, %c3] : memref<1x5xf32, #tpu.memory_space<smem>>
      memref.store %cst_35, %arg7[%c0_36, %c3] : memref<1x5xf32, #tpu.memory_space<smem>>
      %cst_37 = arith.constant 0.000000e+00 : f32
      %c0_38 = arith.constant 0 : index
      %c4 = arith.constant 4 : index
      %41 = memref.load %arg7[%c0_38, %c4] : memref<1x5xf32, #tpu.memory_space<smem>>
      memref.store %cst_37, %arg7[%c0_38, %c4] : memref<1x5xf32, #tpu.memory_space<smem>>
    } else {
    }
    %c0_i32_1 = arith.constant 0 : i32
    %3 = arith.cmpi eq, %arg0, %c0_i32_1 : i32
    %c0_i32_2 = arith.constant 0 : i32
    %4 = arith.cmpi eq, %arg1, %c0_i32_2 : i32
    %5 = arith.andi %3, %4 : i1
    %6 = arith.extui %5 : i1 to i32
    %c0_i32_3 = arith.constant 0 : i32
    %7 = arith.cmpi ne, %6, %c0_i32_3 : i32
    scf.if %7 {
      %c6 = arith.constant 6 : index
      %c0_24 = arith.constant 0 : index
      %c0_25 = arith.constant 0 : index
      %35 = vector.load %arg2[%c6, %c0_24, %c0_25] : memref<7x2x8xf32, #tpu.memory_space<vmem>>, vector<1x2x8xf32>
      %36 = vector.shape_cast %35 : vector<1x2x8xf32> to vector<2x8xf32>
      %c0_26 = arith.constant 0 : index
      %c0_27 = arith.constant 0 : index
      %c0_28 = arith.constant 0 : index
      %37 = vector.load %arg2[%c0_26, %c0_27, %c0_28] : memref<7x2x8xf32, #tpu.memory_space<vmem>>, vector<1x2x8xf32>
      %38 = vector.shape_cast %37 : vector<1x2x8xf32> to vector<2x8xf32>
      %c1_29 = arith.constant 1 : index
      %c0_30 = arith.constant 0 : index
      %c0_31 = arith.constant 0 : index
      %39 = vector.load %arg2[%c1_29, %c0_30, %c0_31] : memref<7x2x8xf32, #tpu.memory_space<vmem>>, vector<1x2x8xf32>
      %40 = vector.shape_cast %39 : vector<1x2x8xf32> to vector<2x8xf32>
      %41 = arith.subf %38, %40 : vector<2x8xf32>
      %42 = arith.mulf %41, %36 : vector<2x8xf32>
      %43 = arith.mulf %42, %42 : vector<2x8xf32>
      %44 = vector.shape_cast %43 : vector<2x8xf32> to vector<1x2x8xf32>
      %cst = arith.constant dense<0.000000e+00> : vector<1xf32>
      %45 = vector.multi_reduction <add>, %44, %cst [1, 2] : vector<1x2x8xf32> to vector<1xf32>
      %46 = vector.shape_cast %45 : vector<1xf32> to vector<1x1x1xf32>
      %47 = vector.extract %46[0, 0, 0] : f32 from vector<1x1x1xf32>
      %c0_32 = arith.constant 0 : index
      %c0_33 = arith.constant 0 : index
      %48 = memref.load %arg7[%c0_32, %c0_33] : memref<1x5xf32, #tpu.memory_space<smem>>
      memref.store %47, %arg7[%c0_32, %c0_33] : memref<1x5xf32, #tpu.memory_space<smem>>
      %c2 = arith.constant 2 : index
      %c0_34 = arith.constant 0 : index
      %c0_35 = arith.constant 0 : index
      %49 = vector.load %arg2[%c2, %c0_34, %c0_35] : memref<7x2x8xf32, #tpu.memory_space<vmem>>, vector<1x2x8xf32>
      %50 = vector.shape_cast %49 : vector<1x2x8xf32> to vector<2x8xf32>
      %c3 = arith.constant 3 : index
      %c0_36 = arith.constant 0 : index
      %c0_37 = arith.constant 0 : index
      %51 = vector.load %arg2[%c3, %c0_36, %c0_37] : memref<7x2x8xf32, #tpu.memory_space<vmem>>, vector<1x2x8xf32>
      %52 = vector.shape_cast %51 : vector<1x2x8xf32> to vector<2x8xf32>
      %53 = arith.subf %50, %52 : vector<2x8xf32>
      %54 = arith.mulf %53, %36 : vector<2x8xf32>
      %55 = math.absf %54 : vector<2x8xf32>
      %56 = vector.shape_cast %55 : vector<2x8xf32> to vector<1x2x8xf32>
      %cst_38 = arith.constant dense<0.000000e+00> : vector<1xf32>
      %57 = vector.multi_reduction <add>, %56, %cst_38 [1, 2] : vector<1x2x8xf32> to vector<1xf32>
      %58 = vector.shape_cast %57 : vector<1xf32> to vector<1x1x1xf32>
      %59 = vector.extract %58[0, 0, 0] : f32 from vector<1x1x1xf32>
      %c0_39 = arith.constant 0 : index
      %c1_40 = arith.constant 1 : index
      %60 = memref.load %arg7[%c0_39, %c1_40] : memref<1x5xf32, #tpu.memory_space<smem>>
      memref.store %59, %arg7[%c0_39, %c1_40] : memref<1x5xf32, #tpu.memory_space<smem>>
      %c4 = arith.constant 4 : index
      %c0_41 = arith.constant 0 : index
      %c0_42 = arith.constant 0 : index
      %61 = vector.load %arg2[%c4, %c0_41, %c0_42] : memref<7x2x8xf32, #tpu.memory_space<vmem>>, vector<1x2x8xf32>
      %62 = vector.shape_cast %61 : vector<1x2x8xf32> to vector<2x8xf32>
      %c5 = arith.constant 5 : index
      %c0_43 = arith.constant 0 : index
      %c0_44 = arith.constant 0 : index
      %63 = vector.load %arg2[%c5, %c0_43, %c0_44] : memref<7x2x8xf32, #tpu.memory_space<vmem>>, vector<1x2x8xf32>
      %64 = vector.shape_cast %63 : vector<1x2x8xf32> to vector<2x8xf32>
      %cst_45 = arith.constant 1.000000e+00 : f32
      %65 = vector.broadcast %cst_45 : f32 to vector<2x8xf32>
      %66 = arith.addf %64, %65 : vector<2x8xf32>
      %67 = math.log %66 : vector<2x8xf32>
      %68 = arith.subf %62, %67 : vector<2x8xf32>
      %69 = arith.mulf %68, %36 : vector<2x8xf32>
      %70 = arith.mulf %69, %69 : vector<2x8xf32>
      %71 = vector.shape_cast %70 : vector<2x8xf32> to vector<1x2x8xf32>
      %cst_46 = arith.constant dense<0.000000e+00> : vector<1xf32>
      %72 = vector.multi_reduction <add>, %71, %cst_46 [1, 2] : vector<1x2x8xf32> to vector<1xf32>
      %73 = vector.shape_cast %72 : vector<1xf32> to vector<1x1x1xf32>
      %74 = vector.extract %73[0, 0, 0] : f32 from vector<1x1x1xf32>
      %c0_47 = arith.constant 0 : index
      %c2_48 = arith.constant 2 : index
      %75 = memref.load %arg7[%c0_47, %c2_48] : memref<1x5xf32, #tpu.memory_space<smem>>
      memref.store %74, %arg7[%c0_47, %c2_48] : memref<1x5xf32, #tpu.memory_space<smem>>
    } else {
    }
    %c0 = arith.constant 0 : index
    %c0_4 = arith.constant 0 : index
    %8 = vector.load %arg6[%c0, %c0_4] : memref<32x1xf32, #tpu.memory_space<vmem>>, vector<32x1xf32>
    %c0_5 = arith.constant 0 : index
    %c0_6 = arith.constant 0 : index
    %9 = vector.load %arg5[%c0_5, %c0_6] : memref<32x32xf32, #tpu.memory_space<vmem>>, vector<32x32xf32>
    %c0_7 = arith.constant 0 : index
    %c0_8 = arith.constant 0 : index
    %10 = vector.load %arg3[%c0_7, %c0_8] : memref<32x32xf32, #tpu.memory_space<vmem>>, vector<32x32xf32>
    %11 = arith.subf %10, %9 : vector<32x32xf32>
    %12 = vector.broadcast %8 : vector<32x1xf32> to vector<32x32xf32>
    %13 = arith.mulf %11, %12 : vector<32x32xf32>
    %c0_9 = arith.constant 0 : index
    %c0_10 = arith.constant 0 : index
    %14 = vector.load %arg4[%c0_9, %c0_10] : memref<32x32xf32, #tpu.memory_space<vmem>>, vector<32x32xf32>
    %15 = arith.subf %14, %9 : vector<32x32xf32>
    %16 = vector.broadcast %8 : vector<32x1xf32> to vector<32x32xf32>
    %17 = arith.mulf %15, %16 : vector<32x32xf32>
    %c0_11 = arith.constant 0 : index
    %c0_12 = arith.constant 0 : index
    %c0_13 = arith.constant 0 : index
    %18 = vector.load %arg8[%c0_11, %c0_12, %c0_13] : memref<2x32x32xf32, #tpu.memory_space<vmem>>, vector<1x32x32xf32>
    %19 = vector.shape_cast %18 : vector<1x32x32xf32> to vector<32x32xf32>
    %20 = arith.mulf %13, %13 : vector<32x32xf32>
    %21 = arith.addf %19, %20 : vector<32x32xf32>
    %c0_14 = arith.constant 0 : index
    %c0_15 = arith.constant 0 : index
    %c0_16 = arith.constant 0 : index
    %22 = vector.load %arg8[%c0_14, %c0_15, %c0_16] : memref<2x32x32xf32, #tpu.memory_space<vmem>>, vector<1x32x32xf32>
    %23 = vector.shape_cast %22 : vector<1x32x32xf32> to vector<32x32xf32>
    %24 = vector.shape_cast %21 : vector<32x32xf32> to vector<1x32x32xf32>
    tpu.vector_store %arg8[%c0_14, %c0_15, %c0_16], %24 {strides = array<i32>} : memref<2x32x32xf32, #tpu.memory_space<vmem>>, vector<1x32x32xf32>,
    %c1 = arith.constant 1 : index
    %c0_17 = arith.constant 0 : index
    %c0_18 = arith.constant 0 : index
    %25 = vector.load %arg8[%c1, %c0_17, %c0_18] : memref<2x32x32xf32, #tpu.memory_space<vmem>>, vector<1x32x32xf32>
    %26 = vector.shape_cast %25 : vector<1x32x32xf32> to vector<32x32xf32>
    %27 = arith.mulf %17, %17 : vector<32x32xf32>
    %28 = arith.addf %26, %27 : vector<32x32xf32>
    %c1_19 = arith.constant 1 : index
    %c0_20 = arith.constant 0 : index
    %c0_21 = arith.constant 0 : index
    %29 = vector.load %arg8[%c1_19, %c0_20, %c0_21] : memref<2x32x32xf32, #tpu.memory_space<vmem>>, vector<1x32x32xf32>
    %30 = vector.shape_cast %29 : vector<1x32x32xf32> to vector<32x32xf32>
    %31 = vector.shape_cast %28 : vector<32x32xf32> to vector<1x32x32xf32>
    tpu.vector_store %arg8[%c1_19, %c0_20, %c0_21], %31 {strides = array<i32>} : memref<2x32x32xf32, #tpu.memory_space<vmem>>, vector<1x32x32xf32>,
    %c0_i32_22 = arith.constant 0 : i32
    %32 = arith.cmpi eq, %arg1, %c0_i32_22 : i32
    %33 = arith.extui %32 : i1 to i32
    %c0_i32_23 = arith.constant 0 : i32
    %34 = arith.cmpi ne, %33, %c0_i32_23 : i32
    scf.if %34 {
      %c0_24 = arith.constant 0 : index
      %c0_25 = arith.constant 0 : index
      %c0_26 = arith.constant 0 : index
      %35 = vector.load %arg8[%c0_24, %c0_25, %c0_26] : memref<2x32x32xf32, #tpu.memory_space<vmem>>, vector<1x32x32xf32>
      %36 = vector.shape_cast %35 : vector<1x32x32xf32> to vector<32x32xf32>
      %37 = vector.shape_cast %36 : vector<32x32xf32> to vector<1x32x32xf32>
      %cst = arith.constant dense<0.000000e+00> : vector<1xf32>
      %38 = vector.multi_reduction <add>, %37, %cst [1, 2] : vector<1x32x32xf32> to vector<1xf32>
      %39 = vector.shape_cast %38 : vector<1xf32> to vector<1x1x1xf32>
      %40 = vector.extract %39[0, 0, 0] : f32 from vector<1x1x1xf32>
      %c0_27 = arith.constant 0 : index
      %c3 = arith.constant 3 : index
      %41 = memref.load %arg7[%c0_27, %c3] : memref<1x5xf32, #tpu.memory_space<smem>>
      memref.store %40, %arg7[%c0_27, %c3] : memref<1x5xf32, #tpu.memory_space<smem>>
      %c1_28 = arith.constant 1 : index
      %c0_29 = arith.constant 0 : index
      %c0_30 = arith.constant 0 : index
      %42 = vector.load %arg8[%c1_28, %c0_29, %c0_30] : memref<2x32x32xf32, #tpu.memory_space<vmem>>, vector<1x32x32xf32>
      %43 = vector.shape_cast %42 : vector<1x32x32xf32> to vector<32x32xf32>
      %44 = vector.shape_cast %43 : vector<32x32xf32> to vector<1x32x32xf32>
      %cst_31 = arith.constant dense<0.000000e+00> : vector<1xf32>
      %45 = vector.multi_reduction <add>, %44, %cst_31 [1, 2] : vector<1x32x32xf32> to vector<1xf32>
      %46 = vector.shape_cast %45 : vector<1xf32> to vector<1x1x1xf32>
      %47 = vector.extract %46[0, 0, 0] : f32 from vector<1x1x1xf32>
      %c0_32 = arith.constant 0 : index
      %c4 = arith.constant 4 : index
      %48 = memref.load %arg7[%c0_32, %c4] : memref<1x5xf32, #tpu.memory_space<smem>>
      memref.store %47, %arg7[%c0_32, %c4] : memref<1x5xf32, #tpu.memory_space<smem>>
    } else {
    }
    return
  }
  func.func @transform_0(%arg0: i32, %arg1: i32) -> (i32, i32, i32) {
    %c0_i32 = arith.constant 0 : i32
    %c0_i32_0 = arith.constant 0 : i32
    %c0_i32_1 = arith.constant 0 : i32
    %c0_i32_2 = arith.constant 0 : i32
    return %c0_i32, %c0_i32_0, %c0_i32_1 : i32, i32, i32
  }
  func.func @transform_1(%arg0: i32, %arg1: i32) -> (i32, i32) {
    %c1_i32 = arith.constant 1 : i32
    %0 = arith.muli %arg0, %c1_i32 : i32
    %1 = arith.addi %0, %arg1 : i32
    %c0_i32 = arith.constant 0 : i32
    %2 = arith.minsi %1, %c0_i32 : i32
    %c0_i32_0 = arith.constant 0 : i32
    %c0_i32_1 = arith.constant 0 : i32
    return %2, %c0_i32_0 : i32, i32
  }
  func.func @transform_2(%arg0: i32, %arg1: i32) -> (i32, i32) {
    %c1_i32 = arith.constant 1 : i32
    %0 = arith.muli %arg0, %c1_i32 : i32
    %1 = arith.addi %0, %arg1 : i32
    %c0_i32 = arith.constant 0 : i32
    %2 = arith.minsi %1, %c0_i32 : i32
    %c0_i32_0 = arith.constant 0 : i32
    %c0_i32_1 = arith.constant 0 : i32
    return %2, %c0_i32_0 : i32, i32
  }
  func.func @transform_3(%arg0: i32, %arg1: i32) -> (i32, i32) {
    %c1_i32 = arith.constant 1 : i32
    %0 = arith.muli %arg0, %c1_i32 : i32
    %1 = arith.addi %0, %arg1 : i32
    %c0_i32 = arith.constant 0 : i32
    %2 = arith.minsi %1, %c0_i32 : i32
    %c0_i32_0 = arith.constant 0 : i32
    %c0_i32_1 = arith.constant 0 : i32
    return %2, %c0_i32_0 : i32, i32
  }
  func.func @transform_4(%arg0: i32, %arg1: i32) -> (i32, i32) {
    %c1_i32 = arith.constant 1 : i32
    %0 = arith.muli %arg0, %c1_i32 : i32
    %1 = arith.addi %0, %arg1 : i32
    %c0_i32 = arith.constant 0 : i32
    %2 = arith.minsi %1, %c0_i32 : i32
    %c0_i32_0 = arith.constant 0 : i32
    %c0_i32_1 = arith.constant 0 : i32
    return %2, %c0_i32_0 : i32, i32
  }
  func.func @transform_5(%arg0: i32, %arg1: i32) -> (i32, i32) {
    %c0_i32 = arith.constant 0 : i32
    %c0_i32_0 = arith.constant 0 : i32
    return %arg0, %c0_i32 : i32, i32
  }
}

</mosaic_0001>

<llo_original>
// kernel: tpu_custom_call.1
$region0: #{tpu_custom_call.1}
  #allocation0 [shape = 'u32[]', space=smem, size = 0x4, offset = 0x4, fixed_abs, tag = 'smem constant byte address 0x4 - core index']
  #allocation1 [shape = 'u32[144,128]{1,0:T(1,128)}', space=vmem, size = 0x12000, scoped, tag = 'internal scratch']
  #allocation2 [shape = 'f32[2,32,32]{2,1,0:T(8,128)}', space=vmem, size = 0x8000, scoped, tag = 'scratch operand']
  %s0 = inlined_call_operand.hbm [shape: f32[7,2,8], index: 0, kind: input, shape index: {}]
  %s1 = inlined_call_operand.vmem [shape: f32[32,32], index: 1, kind: input, shape index: {}]
  %s2 = inlined_call_operand.hbm [shape: f32[32,32], index: 2, kind: input, shape index: {}]
  %s3 = inlined_call_operand.hbm [shape: f32[32,32], index: 3, kind: input, shape index: {}]
  %s4 = inlined_call_operand.vmem [shape: f32[32,1], index: 4, kind: input, shape index: {}]
  %s5 = inlined_call_operand.hbm [shape: f32[1,5], index: 5, kind: output, shape index: {}]
  %s6 = sld [smem:[#allocation0]]
  $region54: #{tpu_custom_call.1} parent=0
    _
  %s8 = ssub.s32 1, %s6
  %s9 = scalar_select 0, %s8, %s6
  $region1: #{tpu_custom_call.1} parent=0
    #allocation3 [shape = 'u8[7168]{0}', space=vmem, size = 0x1c00, scoped, tag = 'input window, operand 0, single buffered']
    #allocation4 [shape = 's32[1]{0}', space=sflag, size = 0x4, scoped, tag = 'scoped memory for tpu_custom_call.1']
    #allocation5 [shape = 's32[1]{0}', space=sflag, size = 0x4, scoped, tag = 'scoped memory for tpu_custom_call.1']
    #allocation6 [shape = 'u8[16384]{0}', space=vmem, size = 0x4000, scoped, tag = 'input window, operand 2, single buffered']
    #allocation7 [shape = 's32[1]{0}', space=sflag, size = 0x4, scoped, tag = 'scoped memory for tpu_custom_call.1']
    #allocation8 [shape = 'u8[16384]{0}', space=vmem, size = 0x4000, scoped, tag = 'input window, operand 3, single buffered']
    #allocation9 [shape = 'u8[512]{0}', space=smem, size = 0x200, scoped, tag = 'output window, operand 0, single buffered']
    %10 = vsyncpa [#allocation4], 0
    %11 = vsyncpa [#allocation7], 0
    %12 = vsyncpa [#allocation5], 0
    // Predicated region
    $region2: #{tpu_custom_call.1} parent=1 // pred_check
      _
    $region3: #{tpu_custom_call.1} parent=1 // pred_check_branch
      %14 = sbr.rel (0) target = $region5
    $region4: #{tpu_custom_call.1} parent=1 // pred_region
      %s16 = ssub.s32 224, 224
      %17 = vsyncadd [#allocation4], %s16
      %s18 = sshll.u32 [#allocation3], 4
      %s19 = int_to_ptr.vmem [resolvable:$true] %s18
      %24 = dma.hbm_to_vmem [thread:$0]  %s0, 224, %s19, [#allocation4], 32, 32, 2
    $region5: #{tpu_custom_call.1} parent=1 // pred_fallthru
      _
    // Predicated region
    $region6: #{tpu_custom_call.1} parent=1 // pred_check
      _
    $region7: #{tpu_custom_call.1} parent=1 // pred_check_branch
      %26 = sbr.rel (0) target = $region9
    $region8: #{tpu_custom_call.1} parent=1 // pred_region
      %s27 = sadd.s32 0, 0
      %p28 = scmp.lt.s32.totalorder %s27, 0
      %s29 = scalar_select %p28, %s27, 0
      %s30 = smul.u32 4, %s29
      %p31 = scmp.lt.s32.totalorder %s30, 3
      %s32 = scalar_select %p31, %s30, 3
      %s33 = smul.addr %s32, 8
      %s34 = scalar_lea.vmem %s1, %s33
      %s35 = sadd.s32 0, 0
      %p36 = scmp.lt.s32.totalorder %s35, 0
      %s37 = scalar_select %p36, %s35, 0
      %s38 = smul.u32 4, %s37
    $region9: #{tpu_custom_call.1} parent=1 // pred_fallthru
      _
    // Predicated region
    $region10: #{tpu_custom_call.1} parent=1 // pred_check
      _
    $region11: #{tpu_custom_call.1} parent=1 // pred_check_branch
      %40 = sbr.rel (0) target = $region13
    $region12: #{tpu_custom_call.1} parent=1 // pred_region
      %s41 = sadd.s32 0, 0
      %p42 = scmp.lt.s32.totalorder %s41, 0
      %s43 = scalar_select %p42, %s41, 0
      %s44 = smul.u32 4, %s43
      %s46 = ssub.s32 512, 512
      %47 = vsyncadd [#allocation7], %s46
      %s48 = smul.addr %s44, 128
      %s49 = scalar_lea.hbm %s2, %s48
      %s50 = sshll.u32 [#allocation6], 4
      %s51 = int_to_ptr.vmem [resolvable:$true] %s50
      %56 = dma.hbm_to_vmem [thread:$0]  %s49, 512, %s51, [#allocation7], 128, 128, 8
    $region13: #{tpu_custom_call.1} parent=1 // pred_fallthru
      _
    // Predicated region
    $region14: #{tpu_custom_call.1} parent=1 // pred_check
      _
    $region15: #{tpu_custom_call.1} parent=1 // pred_check_branch
      %58 = sbr.rel (0) target = $region17
    $region16: #{tpu_custom_call.1} parent=1 // pred_region
      %s59 = sadd.s32 0, 0
      %p60 = scmp.lt.s32.totalorder %s59, 0
      %s61 = scalar_select %p60, %s59, 0
      %s62 = smul.u32 4, %s61
      %s64 = ssub.s32 512, 512
      %65 = vsyncadd [#allocation7], %s64
      %s66 = smul.addr %s62, 128
      %s67 = scalar_lea.hbm %s3, %s66
      %s68 = sshll.u32 [#allocation8], 4
      %s69 = int_to_ptr.vmem [resolvable:$true] %s68
      %74 = dma.hbm_to_vmem [thread:$0]  %s67, 512, %s69, [#allocation7], 128, 128, 8
    $region17: #{tpu_custom_call.1} parent=1 // pred_fallthru
      _
    // Predicated region
    $region18: #{tpu_custom_call.1} parent=1 // pred_check
      _
    $region19: #{tpu_custom_call.1} parent=1 // pred_check_branch
      %76 = sbr.rel (0) target = $region21
    $region20: #{tpu_custom_call.1} parent=1 // pred_region
      %s77 = sadd.s32 0, 0
      %p78 = scmp.lt.s32.totalorder %s77, 0
      %s79 = scalar_select %p78, %s77, 0
      %s80 = smul.u32 4, %s79
      %p81 = scmp.lt.s32.totalorder %s80, 3
      %s82 = scalar_select %p81, %s80, 3
      %s83 = smul.addr %s82, 8
      %s84 = scalar_lea.vmem %s4, %s83
      %s85 = sadd.s32 0, 0
      %p86 = scmp.lt.s32.totalorder %s85, 0
      %s87 = scalar_select %p86, %s85, 0
      %s88 = smul.u32 4, %s87
    $region21: #{tpu_custom_call.1} parent=1 // pred_fallthru
      _
    // Predicated region
    $region22: #{tpu_custom_call.1} parent=1 // pred_check
      _
    $region23: #{tpu_custom_call.1} parent=1 // pred_check_branch
      %90 = sbr.rel (0) target = $region25
    $region24: #{tpu_custom_call.1} parent=1 // pred_region
      %91 = dma.done [#allocation4], 224
    $region25: #{tpu_custom_call.1} parent=1 // pred_fallthru
      _
    // Predicated region
    $region26: #{tpu_custom_call.1} parent=1 // pred_check
      _
    $region27: #{tpu_custom_call.1} parent=1 // pred_check_branch
      %93 = sbr.rel (0) target = $region29
    $region28: #{tpu_custom_call.1} parent=1 // pred_region
      %94 = dma.done [#allocation7], 512
    $region29: #{tpu_custom_call.1} parent=1 // pred_fallthru
      _
    // Predicated region
    $region30: #{tpu_custom_call.1} parent=1 // pred_check
      _
    $region31: #{tpu_custom_call.1} parent=1 // pred_check_branch
      %96 = sbr.rel (0) target = $region33
    $region32: #{tpu_custom_call.1} parent=1 // pred_region
      %97 = dma.done [#allocation7], 512
    $region33: #{tpu_custom_call.1} parent=1 // pred_fallthru
      _
    %s98 = sadd.s32 0, 0
    %p99 = scmp.lt.s32.totalorder %s98, 0
    %s100 = scalar_select %p99, %s98, 0
    %s101 = smul.u32 4, %s100
    %p102 = scmp.lt.s32.totalorder %s101, 3
    %s103 = scalar_select %p102, %s101, 3
    %s104 = smul.addr %s103, 8
    %s105 = scalar_lea.vmem %s1, %s104
    %s106 = sadd.s32 0, 0
    %p107 = scmp.lt.s32.totalorder %s106, 0
    %s108 = scalar_select %p107, %s106, 0
    %s109 = smul.u32 4, %s108
    %p110 = scmp.lt.s32.totalorder %s109, 3
    %s111 = scalar_select %p110, %s109, 3
    %s112 = smul.addr %s111, 8
    %s113 = scalar_lea.vmem %s4, %s112
    %s114 = sadd.s32 0, 0
    %p115 = scmp.lt.s32.totalorder %s114, 0
    %s116 = scalar_select %p115, %s114, 0
    %s117 = smul.u32 4, %s116
    %p118 = scmp.lt.s32.totalorder %s117, 3
    %s119 = scalar_select %p118, %s117, 3
    %s120 = smul.addr %s119, 8
    %s121 = scalar_lea.vmem %s1, %s120
    %s122 = sadd.s32 0, 0
    %p123 = scmp.lt.s32.totalorder %s122, 0
    %s124 = scalar_select %p123, %s122, 0
    %s125 = smul.u32 4, %s124
    %s126 = sadd.s32 0, 0
    %p127 = scmp.lt.s32.totalorder %s126, 0
    %s128 = scalar_select %p127, %s126, 0
    %s129 = smul.u32 4, %s128
    %s130 = sadd.s32 0, 0
    %p131 = scmp.lt.s32.totalorder %s130, 0
    %s132 = scalar_select %p131, %s130, 0
    %s133 = smul.u32 4, %s132
    %s134 = sadd.s32 0, 0
    %p135 = scmp.lt.s32.totalorder %s134, 0
    %s136 = scalar_select %p135, %s134, 0
    %s137 = smul.u32 4, %s136
    %p138 = scmp.lt.s32.totalorder %s137, 3
    %s139 = scalar_select %p138, %s137, 3
    %s140 = smul.addr %s139, 8
    %s141 = scalar_lea.vmem %s4, %s140
    %s142 = sadd.s32 0, 0
    %p143 = scmp.lt.s32.totalorder %s142, 0
    %s144 = scalar_select %p143, %s142, 0
    %s145 = smul.u32 4, %s144
    %p146 = scmp.eq.s32.totalorder 0, 0
    // Predicated region
    $region34: #{tpu_custom_call.1} parent=1 // pred_check
      %p147 = pneg %p146
    $region35: #{tpu_custom_call.1} parent=1 // pred_check_branch
      %149 = sbr.rel (%p147) target = $region37
    $region36: #{tpu_custom_call.1} parent=1 // pred_region
      %vm150 = vcmask 261120
      %151 = vst.msk [vmem:[#allocation2] sm:$0xff] %vm150, 0.0
      %152 = vst.msk [vmem:[#allocation2 + $0x8] sm:$0xff] %vm150, 0.0
      %153 = vst.msk [vmem:[#allocation2 + $0x10] sm:$0xff] %vm150, 0.0
      %154 = vst.msk [vmem:[#allocation2 + $0x18] sm:$0xff] %vm150, 0.0
      %155 = vst.msk [vmem:[#allocation2 + $0x20] sm:$0xff] %vm150, 0.0
      %156 = vst.msk [vmem:[#allocation2 + $0x28] sm:$0xff] %vm150, 0.0
      %157 = vst.msk [vmem:[#allocation2 + $0x30] sm:$0xff] %vm150, 0.0
      %158 = vst.msk [vmem:[#allocation2 + $0x38] sm:$0xff] %vm150, 0.0
      %s159 = scalar_lea.smem [#allocation9], 0
      %160 = sst [smem:[%s159]] 0.0
      %s161 = scalar_lea.smem [#allocation9], 1
      %162 = sst [smem:[%s161]] 0.0
      %s163 = scalar_lea.smem [#allocation9], 2
      %164 = sst [smem:[%s163]] 0.0
      %s165 = scalar_lea.smem [#allocation9], 3
      %166 = sst [smem:[%s165]] 0.0
      %s167 = scalar_lea.smem [#allocation9], 4
      %168 = sst [smem:[%s167]] 0.0
    $region37: #{tpu_custom_call.1} parent=1 // pred_fallthru
      _
    %p169 = scmp.eq.s32.totalorder 0, 0
    %p170 = pnand %p169, %p146
    %p171 = pneg %p170
    // Predicated region
    $region38: #{tpu_custom_call.1} parent=1 // pred_check
      _
    $region39: #{tpu_custom_call.1} parent=1 // pred_check_branch
      %173 = sbr.rel (%p170) target = $region41
    $region40: #{tpu_custom_call.1} parent=1 // pred_region
      %s174 = scalar_lea.vmem [#allocation3], 12
      %v175 = vld [vmem:[%s174] sm:$0x3]
      %v176 = vld [vmem:[#allocation3] sm:$0x3]
      %s177 = scalar_lea.vmem [#allocation3], 2
      %v178 = vld [vmem:[%s177] sm:$0x3]
      %v179 = vsub.f32 %v176, %v178
      %v180 = vmul.f32 %v179, %v175
      %v181 = vmul.f32 %v180, %v180
      %vm182 = vcmask 58368
      %v183 = vsel %vm182, %v181, 0.0
      %184 = vadd.xlane.f32.xlu0 %v183
      %v185 = vpop.xlane.xlu0 %184
      %v186 = vrot.slane %v185, 4
      %v187 = vadd.f32 %v185, %v186
      %v188 = vrot.slane %v187, 2
      %v189 = vadd.f32 %v187, %v188
      %v190 = vrot.slane %v189, 1
      %v191 = vadd.f32 %v189, %v190
      %s192 = vtos %v191
      %s193 = scalar_lea.smem [#allocation9], 0
      %194 = sst [smem:[%s193]] %s192
      %s195 = scalar_lea.vmem [#allocation3], 4
      %v196 = vld [vmem:[%s195] sm:$0x3]
      %s197 = scalar_lea.vmem [#allocation3], 6
      %v198 = vld [vmem:[%s197] sm:$0x3]
      %v199 = vsub.f32 %v196, %v198
      %v200 = vmul.f32 %v199, %v175
      %v201 = vand.u32 2147483647, %v200
      %v202 = vsel %vm182, %v201, 0.0
      %203 = vadd.xlane.f32.xlu0 %v202
      %v204 = vpop.xlane.xlu0 %203
      %v205 = vrot.slane %v204, 4
      %v206 = vadd.f32 %v204, %v205
      %v207 = vrot.slane %v206, 2
      %v208 = vadd.f32 %v206, %v207
      %v209 = vrot.slane %v208, 1
      %v210 = vadd.f32 %v208, %v209
      %s211 = vtos %v210
      %s212 = scalar_lea.smem [#allocation9], 1
      %213 = sst [smem:[%s212]] %s211
      %s214 = scalar_lea.vmem [#allocation3], 8
      %v215 = vld [vmem:[%s214] sm:$0x3]
      %s216 = scalar_lea.vmem [#allocation3], 10
      %v217 = vld [vmem:[%s216] sm:$0x3]
      %v218 = vadd.f32 %v217, 1.0
      %v219 = vlog2.pop %v218
      %v220 = vmul.f32 %v219, 0.6931472
      %v221 = vsub.f32 %v215, %v220
      %v222 = vmul.f32 %v221, %v175
      %v223 = vmul.f32 %v222, %v222
      %v224 = vsel %vm182, %v223, 0.0
      %225 = vadd.xlane.f32.xlu0 %v224
      %v226 = vpop.xlane.xlu0 %225
      %v227 = vrot.slane %v226, 4
      %v228 = vadd.f32 %v226, %v227
      %v229 = vrot.slane %v228, 2
      %v230 = vadd.f32 %v228, %v229
      %v231 = vrot.slane %v230, 1
      %v232 = vadd.f32 %v230, %v231
      %s233 = vtos %v232
      %s234 = scalar_lea.smem [#allocation9], 2
      %235 = sst [smem:[%s234]] %s233
    $region41: #{tpu_custom_call.1} parent=1 // pred_fallthru
      _
    %v236 = vld [vmem:[%s141] sm:$0xff]
    %v237 = vld [vmem:[%s141 + $0x8] sm:$0xff]
    %v238 = vld [vmem:[%s141 + $0x10] sm:$0xff]
    %v239 = vld [vmem:[%s141 + $0x18] sm:$0xff]
    %v240 = vld [vmem:[#allocation8] sm:$0xff]
    %v241 = vld [vmem:[#allocation8 + $0x8] sm:$0xff]
    %v242 = vld [vmem:[#allocation8 + $0x10] sm:$0xff]
    %v243 = vld [vmem:[#allocation8 + $0x18] sm:$0xff]
    %v244 = vld [vmem:[%s121] sm:$0xff]
    %v245 = vld [vmem:[%s121 + $0x8] sm:$0xff]
    %v246 = vld [vmem:[%s121 + $0x10] sm:$0xff]
    %v247 = vld [vmem:[%s121 + $0x18] sm:$0xff]
    %v248 = vsub.f32 %v244, %v240
    %v249 = vsub.f32 %v245, %v241
    %v250 = vsub.f32 %v246, %v242
    %v251 = vsub.f32 %v247, %v243
    %253 = vset.pattern.permute.xlu0 0
    %254 = vperm.xlu0 %253, %v236
    %v255 = vpop.permute.xlu0 %254
    %258 = vset.pattern.permute.xlu0 0
    %259 = vperm.xlu0 %258, %v237
    %v260 = vpop.permute.xlu0 %259
    %263 = vset.pattern.permute.xlu0 0
    %264 = vperm.xlu0 %263, %v238
    %v265 = vpop.permute.xlu0 %264
    %268 = vset.pattern.permute.xlu0 0
    %269 = vperm.xlu0 %268, %v239
    %v270 = vpop.permute.xlu0 %269
    %v272 = vmul.f32 %v248, %v255
    %v273 = vmul.f32 %v249, %v260
    %v274 = vmul.f32 %v250, %v265
    %v275 = vmul.f32 %v251, %v270
    %v276 = vld [vmem:[#allocation6] sm:$0xff]
    %v277 = vld [vmem:[#allocation6 + $0x8] sm:$0xff]
    %v278 = vld [vmem:[#allocation6 + $0x10] sm:$0xff]
    %v279 = vld [vmem:[#allocation6 + $0x18] sm:$0xff]
    %v280 = vsub.f32 %v276, %v240
    %v281 = vsub.f32 %v277, %v241
    %v282 = vsub.f32 %v278, %v242
    %v283 = vsub.f32 %v279, %v243
    %v284 = vmul.f32 %v280, %v255
    %v285 = vmul.f32 %v281, %v260
    %v286 = vmul.f32 %v282, %v265
    %v287 = vmul.f32 %v283, %v270
    %v288 = vld [vmem:[#allocation2] sm:$0xff]
    %v289 = vld [vmem:[#allocation2 + $0x8] sm:$0xff]
    %v290 = vld [vmem:[#allocation2 + $0x10] sm:$0xff]
    %v291 = vld [vmem:[#allocation2 + $0x18] sm:$0xff]
    %v292 = vmul.f32 %v272, %v272
    %v293 = vmul.f32 %v273, %v273
    %v294 = vmul.f32 %v274, %v274
    %v295 = vmul.f32 %v275, %v275
    %v296 = vadd.f32 %v288, %v292
    %v297 = vadd.f32 %v289, %v293
    %v298 = vadd.f32 %v290, %v294
    %v299 = vadd.f32 %v291, %v295
    %vm300 = vcmask 261120
    %301 = vst.msk [vmem:[#allocation2] sm:$0xff] %vm300, %v296
    %302 = vst.msk [vmem:[#allocation2 + $0x8] sm:$0xff] %vm300, %v297
    %303 = vst.msk [vmem:[#allocation2 + $0x10] sm:$0xff] %vm300, %v298
    %304 = vst.msk [vmem:[#allocation2 + $0x18] sm:$0xff] %vm300, %v299
    %s305 = scalar_lea.vmem [#allocation2], 32
    %v306 = vld [vmem:[%s305] sm:$0xff]
    %v307 = vld [vmem:[%s305 + $0x8] sm:$0xff]
    %v308 = vld [vmem:[%s305 + $0x10] sm:$0xff]
    %v309 = vld [vmem:[%s305 + $0x18] sm:$0xff]
    %v310 = vmul.f32 %v284, %v284
    %v311 = vmul.f32 %v285, %v285
    %v312 = vmul.f32 %v286, %v286
    %v313 = vmul.f32 %v287, %v287
    %v314 = vadd.f32 %v306, %v310
    %v315 = vadd.f32 %v307, %v311
    %v316 = vadd.f32 %v308, %v312
    %v317 = vadd.f32 %v309, %v313
    %318 = vst.msk [vmem:[%s305] sm:$0xff] %vm300, %v314
    %319 = vst.msk [vmem:[%s305 + $0x8] sm:$0xff] %vm300, %v315
    %320 = vst.msk [vmem:[%s305 + $0x10] sm:$0xff] %vm300, %v316
    %321 = vst.msk [vmem:[%s305 + $0x18] sm:$0xff] %vm300, %v317
    // Predicated region
    $region42: #{tpu_custom_call.1} parent=1 // pred_check
      %p322 = pneg %p146
    $region43: #{tpu_custom_call.1} parent=1 // pred_check_branch
      %324 = sbr.rel (%p322) target = $region45
    $region44: #{tpu_custom_call.1} parent=1 // pred_region
      %v325 = vld [vmem:[#allocation2] sm:$0xff]
      %v326 = vld [vmem:[#allocation2 + $0x8] sm:$0xff]
      %v327 = vld [vmem:[#allocation2 + $0x10] sm:$0xff]
      %v328 = vld [vmem:[#allocation2 + $0x18] sm:$0xff]
      %v329 = vsel %vm300, %v325, 0.0
      %v330 = vsel %vm300, %v326, 0.0
      %v331 = vadd.f32 %v329, %v330
      %v332 = vsel %vm300, %v327, 0.0
      %v333 = vadd.f32 %v331, %v332
      %v334 = vsel %vm300, %v328, 0.0
      %v335 = vadd.f32 %v333, %v334
      %336 = vadd.xlane.f32.xlu0 %v335
      %v337 = vpop.xlane.xlu0 %336
      %v338 = vrot.slane %v337, 4
      %v339 = vadd.f32 %v337, %v338
      %v340 = vrot.slane %v339, 2
      %v341 = vadd.f32 %v339, %v340
      %v342 = vrot.slane %v341, 1
      %v343 = vadd.f32 %v341, %v342
      %s344 = vtos %v343
      %s345 = scalar_lea.smem [#allocation9], 3
      %346 = sst [smem:[%s345]] %s344
      %v347 = vld [vmem:[%s305] sm:$0xff]
      %v348 = vld [vmem:[%s305 + $0x8] sm:$0xff]
      %v349 = vld [vmem:[%s305 + $0x10] sm:$0xff]
      %v350 = vld [vmem:[%s305 + $0x18] sm:$0xff]
      %v351 = vsel %vm300, %v347, 0.0
      %v352 = vsel %vm300, %v348, 0.0
      %v353 = vadd.f32 %v351, %v352
      %v354 = vsel %vm300, %v349, 0.0
      %v355 = vadd.f32 %v353, %v354
      %v356 = vsel %vm300, %v350, 0.0
      %v357 = vadd.f32 %v355, %v356
      %358 = vadd.xlane.f32.xlu0 %v357
      %v359 = vpop.xlane.xlu0 %358
      %v360 = vrot.slane %v359, 4
      %v361 = vadd.f32 %v359, %v360
      %v362 = vrot.slane %v361, 2
      %v363 = vadd.f32 %v361, %v362
      %v364 = vrot.slane %v363, 1
      %v365 = vadd.f32 %v363, %v364
      %s366 = vtos %v365
      %s367 = scalar_lea.smem [#allocation9], 4
      %368 = sst [smem:[%s367]] %s366
    $region45: #{tpu_custom_call.1} parent=1 // pred_fallthru
      _
    // Predicated region
    $region46: #{tpu_custom_call.1} parent=1 // pred_check
      _
    $region47: #{tpu_custom_call.1} parent=1 // pred_check_branch
      %370 = sbr.rel (0) target = $region49
    $region48: #{tpu_custom_call.1} parent=1 // pred_region
      %s372 = ssub.s32 16, 16
      %373 = vsyncadd [#allocation5], %s372
      %376 = dma.smem_to_hbm [#allocation9], 16, %s5, [#allocation5]
    $region49: #{tpu_custom_call.1} parent=1 // pred_fallthru
      _
    // Predicated region
    $region50: #{tpu_custom_call.1} parent=1 // pred_check
      _
    $region51: #{tpu_custom_call.1} parent=1 // pred_check_branch
      %378 = sbr.rel (0) target = $region53
    $region52: #{tpu_custom_call.1} parent=1 // pred_region
      %379 = dma.done [#allocation5], 16
    $region53: #{tpu_custom_call.1} parent=1 // pred_fallthru
      _
    %380 = sfence
    %381 = vsyncpa [#allocation4], 1
    %382 = vsyncpa [#allocation7], 1
    %383 = vsyncpa [#allocation5], 1

</llo_original>
